<compile_context>
chip_gen: v7x
topology: tpu7x:2x2x1
jax: 0.10.0
libtpu: 0.0.40
codegen_flags: <defaults>
</compile_context>

<pallas_src>
import jax
import jax.numpy as jnp
from jax.experimental import pallas as pl
from jax.experimental.pallas import tpu as pltpu

EPS = 1e-4
LANES = 128
SMALL_FALLBACK_ELEMS = 1 << 17  # below this, a fused XLA elementwise wins


def _round_up(x, m):
    return (x + m - 1) // m * m


def _tile_plan():
    """Per-generation (max_tile_rows, vmem_limit_bytes)."""
    try:
        kind = jax.devices()[0].device_kind.lower()
    except Exception:
        kind = ""
    if "v7" in kind or "7x" in kind:
        # v7x: 64 MiB physical VMEM / TC. 4 MiB tiles -> 32 MiB of buffers.
        return 8192, 48 << 20
    if "v6" in kind:
        # v6e: 128 MiB physical VMEM. 2 MiB tiles -> 16 MiB of buffers.
        return 4096, 32 << 20
    # v5e / v4 / unknown: 1 MiB tiles fit the default 16 MiB scoped VMEM.
    return 2048, None


def _fusion3d_kernel(w_ref, x1_ref, x2_ref, x3_ref, o_ref):
    # w_ref (SMEM, scalar-prefetched): [w1/d, w2/d, 1/d, w3/d] with
    # d = w1 + w2 + w3 + eps, so the per-element divide is already folded in.
    a = w_ref[0]
    b = w_ref[1]
    c = w_ref[2]
    d = w_ref[3]
    o_ref[...] = (
        x1_ref[...] * a + x2_ref[...] * b + x3_ref[...] * c + d
    ).astype(o_ref.dtype)


def fusion3d(x1, x2, x3, w1, w2, w3, eps=EPS):
    """Elementwise BiFPN Fusion3D. x1/x2/x3: same-shape, same-dtype arrays."""
    assert x1.shape == x2.shape == x3.shape, "inputs must share a shape"
    assert x1.dtype == x2.dtype == x3.dtype, "inputs must share a dtype"
    orig_shape = x1.shape
    orig_dtype = x1.dtype
    n_elem = x1.size

    w1 = jnp.asarray(w1, jnp.float32).reshape(())
    w2 = jnp.asarray(w2, jnp.float32).reshape(())
    w3 = jnp.asarray(w3, jnp.float32).reshape(())
    inv = 1.0 / (w1 + w2 + w3 + jnp.float32(eps))
    # Fold the division into the scalars:
    #   out = x1*(w1/d) + x2*(w2/d) + x3*(1/d) + (w3/d)
    w = jnp.stack([w1 * inv, w2 * inv, inv, w3 * inv]).astype(jnp.float32)

    # Small pyramid levels: plain jnp, let XLA fuse it with neighbours.
    if n_elem < SMALL_FALLBACK_ELEMS:
        out = (x1 * w[0] + x2 * w[1] + x3 * w[2] + w[3]).astype(orig_dtype)
        return out.reshape(orig_shape)

    rows = pl.cdiv(n_elem, LANES)
    n_pad = rows * LANES - n_elem

    def slab(x):
        xf = x.reshape(-1)
        if n_pad:
            # Ragged tail: pad once to the next 128 multiple (single pad per
            # input instead of the old 3x slice + full-output concatenate).
            xf = jnp.pad(xf, (0, n_pad))
        return xf.reshape(rows, LANES)

    max_tile_rows, vmem_limit = _tile_plan()
    # Guarantee >= 2 grid steps (both v7x TensorCores get work); keep the
    # sublane dim a multiple of 8 so the BlockSpec is tile-aligned.
    tile_rows = min(max_tile_rows, _round_up(pl.cdiv(rows, 2), 8))
    grid = (pl.cdiv(rows, tile_rows),)

    tile_spec = pl.BlockSpec((tile_rows, LANES), lambda i, w_smem: (i, 0))
    itemsize = jnp.dtype(orig_dtype).itemsize

    out2d = pl.pallas_call(
        _fusion3d_kernel,
        out_shape=jax.ShapeDtypeStruct((rows, LANES), orig_dtype),
        grid_spec=pltpu.PrefetchScalarGridSpec(
            num_scalar_prefetch=1,
            grid=grid,
            in_specs=[tile_spec, tile_spec, tile_spec],
            out_specs=tile_spec,
        ),
        compiler_params=pltpu.CompilerParams(
            dimension_semantics=("parallel",),
            vmem_limit_bytes=vmem_limit,
        ),
        cost_estimate=pl.CostEstimate(
            flops=6 * rows * LANES,
            transcendentals=0,
            bytes_accessed=4 * rows * LANES * itemsize,  # 3 in + 1 out streams
        ),
    )(w, slab(x1), slab(x2), slab(x3))

    out_flat = out2d.reshape(-1)
    if n_pad:
        out_flat = out_flat[:n_elem]
    return out_flat.reshape(orig_shape)


def _reference(x1, x2, x3, w1, w2, w3, eps=EPS):
    # Exact PyTorch forward semantics.
    return (x1 * w1 + x2 * w2 + x3 + w3) / (w1 + w2 + w3 + eps)


if __name__ == "__main__":
    key = jax.random.PRNGKey(0)

    def make_inputs(shape, k):
        k1, k2, k3 = jax.random.split(k, 3)
        return (
            jax.random.normal(k1, shape, dtype=jnp.float32),
            jax.random.normal(k2, shape, dtype=jnp.float32),
            jax.random.normal(k3, shape, dtype=jnp.float32),
        )

    init_value = 0.333
    # Three cases exercise all paths:
    #   small NCHW feature map  -> fused-jnp fallback path
    #   lane-aligned larger map -> Pallas path (grid of 2, no padding)
    #   ragged larger map       -> Pallas path with pad-once tail handling
    cases = [
        ((2, 4, 16, 16), (init_value, init_value, init_value)),
        ((2, 16, 64, 64), (0.2, 0.5, 0.333)),
        ((2, 5, 101, 211), (0.41, 0.27, 0.9)),
    ]

    keys = jax.random.split(key, len(cases))
    for (shape, (w1v, w2v, w3v)), k in zip(cases, keys):
        x1, x2, x3 = make_inputs(shape, k)
        w1 = jnp.asarray(w1v, dtype=jnp.float32)
        w2 = jnp.asarray(w2v, dtype=jnp.float32)
        w3 = jnp.asarray(w3v, dtype=jnp.float32)

        out = jax.block_until_ready(fusion3d(x1, x2, x3, w1, w2, w3))
        ref = _reference(x1, x2, x3, w1, w2, w3)

        assert out.shape == shape and out.dtype == jnp.float32
        assert jnp.allclose(out, ref, atol=1e-5, rtol=1e-5), f"mismatch for {shape}"

    print("KERNEL_OK")
</pallas_src>

<mosaic_0001>
module attributes {stable_mosaic.version = 11 : i64} {
  func.func @_fusion3d_kernel(%arg0: i32, %arg1: memref<4xf32, #tpu.memory_space<smem>>, %arg2: memref<512x128xf32, #tpu.memory_space<vmem>>, %arg3: memref<512x128xf32, #tpu.memory_space<vmem>>, %arg4: memref<512x128xf32, #tpu.memory_space<vmem>>, %arg5: memref<512x128xf32, #tpu.memory_space<vmem>>) attributes {dimension_semantics = [#tpu.dimension_semantics<parallel>], iteration_bounds = array<i64: 2>, scalar_prefetch = 1 : i64, scratch_operands = 0 : i64, tpu.core_type = #tpu.core_type<tc>, window_params = [{transform_indices = @transform_0, window_bounds = array<i64: 512, 128>}, {transform_indices = @transform_1, window_bounds = array<i64: 512, 128>}, {transform_indices = @transform_2, window_bounds = array<i64: 512, 128>}, {transform_indices = @transform_3, window_bounds = array<i64: 512, 128>}]} {
    %c0 = arith.constant 0 : index
    %0 = memref.load %arg1[%c0] : memref<4xf32, #tpu.memory_space<smem>>
    %c1 = arith.constant 1 : index
    %1 = memref.load %arg1[%c1] : memref<4xf32, #tpu.memory_space<smem>>
    %c2 = arith.constant 2 : index
    %2 = memref.load %arg1[%c2] : memref<4xf32, #tpu.memory_space<smem>>
    %c3 = arith.constant 3 : index
    %3 = memref.load %arg1[%c3] : memref<4xf32, #tpu.memory_space<smem>>
    %c0_0 = arith.constant 0 : index
    %c0_1 = arith.constant 0 : index
    %4 = vector.load %arg2[%c0_0, %c0_1] : memref<512x128xf32, #tpu.memory_space<vmem>>, vector<512x128xf32>
    %5 = vector.broadcast %0 : f32 to vector<512x128xf32>
    %6 = arith.mulf %4, %5 : vector<512x128xf32>
    %c0_2 = arith.constant 0 : index
    %c0_3 = arith.constant 0 : index
    %7 = vector.load %arg3[%c0_2, %c0_3] : memref<512x128xf32, #tpu.memory_space<vmem>>, vector<512x128xf32>
    %8 = vector.broadcast %1 : f32 to vector<512x128xf32>
    %9 = arith.mulf %7, %8 : vector<512x128xf32>
    %10 = arith.addf %6, %9 : vector<512x128xf32>
    %c0_4 = arith.constant 0 : index
    %c0_5 = arith.constant 0 : index
    %11 = vector.load %arg4[%c0_4, %c0_5] : memref<512x128xf32, #tpu.memory_space<vmem>>, vector<512x128xf32>
    %12 = vector.broadcast %2 : f32 to vector<512x128xf32>
    %13 = arith.mulf %11, %12 : vector<512x128xf32>
    %14 = arith.addf %10, %13 : vector<512x128xf32>
    %15 = vector.broadcast %3 : f32 to vector<512x128xf32>
    %16 = arith.addf %14, %15 : vector<512x128xf32>
    %c0_6 = arith.constant 0 : index
    %c0_7 = arith.constant 0 : index
    %17 = vector.load %arg5[%c0_6, %c0_7] : memref<512x128xf32, #tpu.memory_space<vmem>>, vector<512x128xf32>
    tpu.vector_store %arg5[%c0_6, %c0_7], %16 {strides = array<i32>} : memref<512x128xf32, #tpu.memory_space<vmem>>, vector<512x128xf32>,
    return
  }
  func.func @transform_0(%arg0: i32, %arg1: memref<4xf32, #tpu.memory_space<smem>>) -> (i32, i32) {
    %c0_i32 = arith.constant 0 : i32
    %c0_i32_0 = arith.constant 0 : i32
    return %arg0, %c0_i32 : i32, i32
  }
  func.func @transform_1(%arg0: i32, %arg1: memref<4xf32, #tpu.memory_space<smem>>) -> (i32, i32) {
    %c0_i32 = arith.constant 0 : i32
    %c0_i32_0 = arith.constant 0 : i32
    return %arg0, %c0_i32 : i32, i32
  }
  func.func @transform_2(%arg0: i32, %arg1: memref<4xf32, #tpu.memory_space<smem>>) -> (i32, i32) {
    %c0_i32 = arith.constant 0 : i32
    %c0_i32_0 = arith.constant 0 : i32
    return %arg0, %c0_i32 : i32, i32
  }
  func.func @transform_3(%arg0: i32, %arg1: memref<4xf32, #tpu.memory_space<smem>>) -> (i32, i32) {
    %c0_i32 = arith.constant 0 : i32
    %c0_i32_0 = arith.constant 0 : i32
    return %arg0, %c0_i32 : i32, i32
  }
}

</mosaic_0001>

<llo_original>
// kernel: tpu_custom_call.1
$region0: #{tpu_custom_call.1}
  #allocation0 [shape = 'u32[]', space=smem, size = 0x4, offset = 0x4, fixed_abs, tag = 'smem constant byte address 0x4 - core index']
  #allocation1 [shape = 'u32[144,128]{1,0:T(1,128)}', space=vmem, size = 0x12000, scoped, tag = 'internal scratch']
  #allocation2 [shape = 's32[1]{0}', space=sflag, size = 0x4, scoped, tag = 'scoped memory for tpu_custom_call.1']
  #allocation3 [shape = 'u8[512]{0}', space=smem, size = 0x200, scoped, tag = 'prefetched SMEM operand 0']
  %s0 = inlined_call_operand.hbm [shape: f32[4], index: 0, kind: input, shape index: {}]
  %s1 = inlined_call_operand.hbm [shape: f32[1024,128], index: 1, kind: input, shape index: {}]
  %s2 = inlined_call_operand.hbm [shape: f32[1024,128], index: 2, kind: input, shape index: {}]
  %s3 = inlined_call_operand.hbm [shape: f32[1024,128], index: 3, kind: input, shape index: {}]
  %s4 = inlined_call_operand.hbm [shape: f32[1024,128], index: 4, kind: output, shape index: {}]
  %s5 = sld [smem:[#allocation0]]
  $region57: #{tpu_custom_call.1} parent=0
    _
  %s7 = ssub.s32 1, %s5
  %s8 = scalar_select 0, %s7, %s5
  %10 = dma.hbm_to_smem %s0, 16, [#allocation3], [#allocation2]
  %11 = dma.done [#allocation2], 16
  %12 = sfence
  $region1: #{tpu_custom_call.1} parent=0
    #allocation4 [shape = 'u8[524288]{0}', space=vmem, size = 0x80000, scoped, tag = 'input window, operand 1']
    #allocation5 [shape = 's32[2]{0}', space=sflag, size = 0x8, scoped, tag = 'scoped memory for tpu_custom_call.1']
    #allocation6 [shape = 's32[2]{0}', space=sflag, size = 0x8, scoped, tag = 'scoped memory for tpu_custom_call.1']
    #allocation7 [shape = 'u8[524288]{0}', space=vmem, size = 0x80000, scoped, tag = 'input window, operand 2']
    #allocation8 [shape = 's32[2]{0}', space=sflag, size = 0x8, scoped, tag = 'scoped memory for tpu_custom_call.1']
    #allocation9 [shape = 'u8[524288]{0}', space=vmem, size = 0x80000, scoped, tag = 'input window, operand 3']
    #allocation10 [shape = 'u8[524288]{0}', space=vmem, size = 0x80000, scoped, tag = 'output window, operand 0']
    %13 = vsyncpa [#allocation5], 0
    %s14 = scalar_lea.sflag [#allocation5], 1
    %15 = vsyncpa %s14, 0
    %16 = vsyncpa [#allocation8], 0
    %s17 = scalar_lea.sflag [#allocation8], 1
    %18 = vsyncpa %s17, 0
    %19 = vsyncpa [#allocation6], 0
    %s20 = scalar_lea.sflag [#allocation6], 1
    %21 = vsyncpa %s20, 0
    loop: start=0, step=1, limit=4
    $region2: #{tpu_custom_call.1} parent=1 // loop_pre_header
      _
    $region3: #{tpu_custom_call.1} parent=1 // loop_header
      %s23 = sphi 0, %s27
      %p24 = scmp.ge.s32.totalorder %s23, 4
      %s33 = sphi 0, %s35
      %s36 = sphi 0, %s33
      %s37 = sphi 0, %s36
      %s53 = sphi 0, %s37
      %s59 = sphi 0, %s61
      %s62 = sphi 0, %s59
      %s63 = sphi 0, %s62
      %s79 = sphi 0, %s63
      %s85 = sphi 0, %s87
      %s88 = sphi 0, %s85
      %s89 = sphi 0, %s88
      %s105 = sphi 0, %s89
      %s111 = sphi 0, %s113
      %s114 = sphi 0, %s111
      %s115 = sphi 0, %s114
      %s131 = sphi 0, %s115
    $region4: #{tpu_custom_call.1} parent=1 // loop_header_branch
      %26 = sbr.rel (%p24) target = $region8
    $region5: #{tpu_custom_call.1} parent=1 // loop_body
      %s28 = ssub.s32 %s23, 1
      %s29 = ssub.s32 %s23, 2
      %s30 = sadd.s32 %s23, 1
      %s31 = ssub.s32 %s23, %s30
      %p32 = scmp.eq.s32.totalorder %s31, 0
      %s34 = sadd.s32 %s33, 1
      %s35 = scalar_select %p32, %s33, %s34
      %p38 = pneg %p32
      %p39 = scmp.eq.s32.totalorder %s23, 1
      %p40 = por %p38, %p39
      %p41 = scmp.ne.s32.totalorder %s33, %s36
      %p42 = scmp.eq.s32.totalorder %s23, 0
      %p43 = por %p41, %p42
      %p44 = scmp.ne.s32.totalorder %s33, %s36
      %p45 = scmp.eq.s32.totalorder %s28, 1
      %p46 = por %p44, %p45
      %p47 = scmp.ne.s32.totalorder %s36, %s37
      %p48 = scmp.eq.s32.totalorder %s28, 0
      %p49 = por %p47, %p48
      %p50 = scmp.ne.s32.totalorder %s36, %s37
      %p51 = scmp.eq.s32.totalorder %s29, 1
      %p52 = por %p50, %p51
      %p54 = scmp.ne.s32.totalorder %s37, %s53
      %p55 = scmp.eq.s32.totalorder %s29, 0
      %p56 = por %p54, %p55
      %s57 = ssub.s32 %s23, %s30
      %p58 = scmp.eq.s32.totalorder %s57, 0
      %s60 = sadd.s32 %s59, 1
      %s61 = scalar_select %p58, %s59, %s60
      %p64 = pneg %p58
      %p65 = scmp.eq.s32.totalorder %s23, 1
      %p66 = por %p64, %p65
      %p67 = scmp.ne.s32.totalorder %s59, %s62
      %p68 = scmp.eq.s32.totalorder %s23, 0
      %p69 = por %p67, %p68
      %p70 = scmp.ne.s32.totalorder %s59, %s62
      %p71 = scmp.eq.s32.totalorder %s28, 1
      %p72 = por %p70, %p71
      %p73 = scmp.ne.s32.totalorder %s62, %s63
      %p74 = scmp.eq.s32.totalorder %s28, 0
      %p75 = por %p73, %p74
      %p76 = scmp.ne.s32.totalorder %s62, %s63
      %p77 = scmp.eq.s32.totalorder %s29, 1
      %p78 = por %p76, %p77
      %p80 = scmp.ne.s32.totalorder %s63, %s79
      %p81 = scmp.eq.s32.totalorder %s29, 0
      %p82 = por %p80, %p81
      %s83 = ssub.s32 %s23, %s30
      %p84 = scmp.eq.s32.totalorder %s83, 0
      %s86 = sadd.s32 %s85, 1
      %s87 = scalar_select %p84, %s85, %s86
      %p90 = pneg %p84
      %p91 = scmp.eq.s32.totalorder %s23, 1
      %p92 = por %p90, %p91
      %p93 = scmp.ne.s32.totalorder %s85, %s88
      %p94 = scmp.eq.s32.totalorder %s23, 0
      %p95 = por %p93, %p94
      %p96 = scmp.ne.s32.totalorder %s85, %s88
      %p97 = scmp.eq.s32.totalorder %s28, 1
      %p98 = por %p96, %p97
      %p99 = scmp.ne.s32.totalorder %s88, %s89
      %p100 = scmp.eq.s32.totalorder %s28, 0
      %p101 = por %p99, %p100
      %p102 = scmp.ne.s32.totalorder %s88, %s89
      %p103 = scmp.eq.s32.totalorder %s29, 1
      %p104 = por %p102, %p103
      %p106 = scmp.ne.s32.totalorder %s89, %s105
      %p107 = scmp.eq.s32.totalorder %s29, 0
      %p108 = por %p106, %p107
      %s109 = ssub.s32 %s23, %s30
      %p110 = scmp.eq.s32.totalorder %s109, 0
      %s112 = sadd.s32 %s111, 1
      %s113 = scalar_select %p110, %s111, %s112
      %p116 = pneg %p110
      %p117 = scmp.eq.s32.totalorder %s23, 1
      %p118 = por %p116, %p117
      %p119 = scmp.ne.s32.totalorder %s111, %s114
      %p120 = scmp.eq.s32.totalorder %s23, 0
      %p121 = por %p119, %p120
      %p122 = scmp.ne.s32.totalorder %s111, %s114
      %p123 = scmp.eq.s32.totalorder %s28, 1
      %p124 = por %p122, %p123
      %p125 = scmp.ne.s32.totalorder %s114, %s115
      %p126 = scmp.eq.s32.totalorder %s28, 0
      %p127 = por %p125, %p126
      %p128 = scmp.ne.s32.totalorder %s114, %s115
      %p129 = scmp.eq.s32.totalorder %s29, 1
      %p130 = por %p128, %p129
      %p132 = scmp.ne.s32.totalorder %s115, %s131
      %p133 = scmp.eq.s32.totalorder %s29, 0
      %p134 = por %p132, %p133
      %p135 = scmp.le.s32.totalorder 1, %s23
      %p136 = scmp.lt.s32.totalorder %s23, 3
      %p137 = pnand %p135, %p136
      %p138 = pneg %p137
      // Predicated region
      $region9: #{tpu_custom_call.1} parent=5 // pred_check
        _
      $region10: #{tpu_custom_call.1} parent=5 // pred_check_branch
        %140 = sbr.rel (%p137) target = $region12
      $region11: #{tpu_custom_call.1} parent=5 // pred_region
        %s141 = ssub.s32 %s23, 1
      $region12: #{tpu_custom_call.1} parent=5 // pred_fallthru
        _
      %p142 = scmp.lt.s32.totalorder %s23, 2
      // Predicated region
      $region13: #{tpu_custom_call.1} parent=5 // pred_check
        %p143 = pneg %p142
      $region14: #{tpu_custom_call.1} parent=5 // pred_check_branch
        %145 = sbr.rel (%p143) target = $region16
      $region15: #{tpu_custom_call.1} parent=5 // pred_region
        // Predicated region
        $region17: #{tpu_custom_call.1} parent=15 // pred_check
          %p146 = pneg %p43
        $region18: #{tpu_custom_call.1} parent=15 // pred_check_branch
          %148 = sbr.rel (%p146) target = $region20
        $region19: #{tpu_custom_call.1} parent=15 // pred_region
          %s149 = sand.u32 %s33, 1
          %s150 = scalar_lea.sflag [#allocation5], %s149
          %s151 = sand.u32 %s33, 1
          %s152 = smul.addr %s151, 512
          %s153 = scalar_lea.vmem [#allocation4], %s152
          %s154 = smul.u32 64, %s23
          %s156 = ssub.s32 8192, 8192
          %157 = vsyncadd %s150, %s156
          %s158 = smul.addr %s154, 128
          %s159 = scalar_lea.hbm %s1, %s158
          %s160 = sshll.u32 %s153, 4
          %s161 = int_to_ptr.vmem [resolvable:$true] %s160
          %166 = dma.hbm_to_vmem [thread:$0]  %s159, 8192, %s161, %s150, 128, 128, 8
        $region20: #{tpu_custom_call.1} parent=15 // pred_fallthru
          _
        // Predicated region
        $region21: #{tpu_custom_call.1} parent=15 // pred_check
          %p167 = pneg %p69
        $region22: #{tpu_custom_call.1} parent=15 // pred_check_branch
          %169 = sbr.rel (%p167) target = $region24
        $region23: #{tpu_custom_call.1} parent=15 // pred_region
          %s170 = sand.u32 %s23, 1
          %s171 = scalar_lea.sflag [#allocation8], %s170
          %s172 = sand.u32 %s59, 1
          %s173 = smul.addr %s172, 512
          %s174 = scalar_lea.vmem [#allocation7], %s173
          %s175 = smul.u32 64, %s23
          %s177 = ssub.s32 8192, 8192
          %178 = vsyncadd %s171, %s177
          %s179 = smul.addr %s175, 128
          %s180 = scalar_lea.hbm %s2, %s179
          %s181 = sshll.u32 %s174, 4
          %s182 = int_to_ptr.vmem [resolvable:$true] %s181
          %187 = dma.hbm_to_vmem [thread:$0]  %s180, 8192, %s182, %s171, 128, 128, 8
        $region24: #{tpu_custom_call.1} parent=15 // pred_fallthru
          _
        // Predicated region
        $region25: #{tpu_custom_call.1} parent=15 // pred_check
          %p188 = pneg %p95
        $region26: #{tpu_custom_call.1} parent=15 // pred_check_branch
          %190 = sbr.rel (%p188) target = $region28
        $region27: #{tpu_custom_call.1} parent=15 // pred_region
          %s191 = sand.u32 %s23, 1
          %s192 = scalar_lea.sflag [#allocation8], %s191
          %s193 = sand.u32 %s85, 1
          %s194 = smul.addr %s193, 512
          %s195 = scalar_lea.vmem [#allocation9], %s194
          %s196 = smul.u32 64, %s23
          %s198 = ssub.s32 8192, 8192
          %199 = vsyncadd %s192, %s198
          %s200 = smul.addr %s196, 128
          %s201 = scalar_lea.hbm %s3, %s200
          %s202 = sshll.u32 %s195, 4
          %s203 = int_to_ptr.vmem [resolvable:$true] %s202
          %208 = dma.hbm_to_vmem [thread:$0]  %s201, 8192, %s203, %s192, 128, 128, 8
        $region28: #{tpu_custom_call.1} parent=15 // pred_fallthru
          _
      $region16: #{tpu_custom_call.1} parent=5 // pred_fallthru
        _
      %p209 = scmp.le.s32.totalorder 1, %s23
      %p210 = scmp.lt.s32.totalorder %s23, 3
      %p211 = pnand %p209, %p210
      %p212 = pneg %p211
      // Predicated region
      $region29: #{tpu_custom_call.1} parent=5 // pred_check
        _
      $region30: #{tpu_custom_call.1} parent=5 // pred_check_branch
        %214 = sbr.rel (%p211) target = $region32
      $region31: #{tpu_custom_call.1} parent=5 // pred_region
        %s215 = ssub.s32 %s23, 1
        %s216 = sand.u32 %s36, 1
        %s217 = scalar_lea.sflag [#allocation5], %s216
        %s218 = sand.u32 %s36, 1
        %s219 = smul.addr %s218, 512
        %s220 = scalar_lea.vmem [#allocation4], %s219
        // Predicated region
        $region33: #{tpu_custom_call.1} parent=31 // pred_check
          %p221 = pneg %p49
        $region34: #{tpu_custom_call.1} parent=31 // pred_check_branch
          %223 = sbr.rel (%p221) target = $region36
        $region35: #{tpu_custom_call.1} parent=31 // pred_region
          %224 = dma.done %s217, 8192
        $region36: #{tpu_custom_call.1} parent=31 // pred_fallthru
          _
        %s225 = sand.u32 %s28, 1
        %s226 = scalar_lea.sflag [#allocation8], %s225
        %s227 = sand.u32 %s62, 1
        %s228 = smul.addr %s227, 512
        %s229 = scalar_lea.vmem [#allocation7], %s228
        // Predicated region
        $region37: #{tpu_custom_call.1} parent=31 // pred_check
          %p230 = pneg %p75
        $region38: #{tpu_custom_call.1} parent=31 // pred_check_branch
          %232 = sbr.rel (%p230) target = $region40
        $region39: #{tpu_custom_call.1} parent=31 // pred_region
          %233 = dma.done %s226, 8192
        $region40: #{tpu_custom_call.1} parent=31 // pred_fallthru
          _
        %s234 = sand.u32 %s28, 1
        %s235 = scalar_lea.sflag [#allocation8], %s234
        %s236 = sand.u32 %s88, 1
        %s237 = smul.addr %s236, 512
        %s238 = scalar_lea.vmem [#allocation9], %s237
        // Predicated region
        $region41: #{tpu_custom_call.1} parent=31 // pred_check
          %p239 = pneg %p101
        $region42: #{tpu_custom_call.1} parent=31 // pred_check_branch
          %241 = sbr.rel (%p239) target = $region44
        $region43: #{tpu_custom_call.1} parent=31 // pred_region
          %242 = dma.done %s235, 8192
        $region44: #{tpu_custom_call.1} parent=31 // pred_fallthru
          _
        %s243 = sand.u32 %s36, 1
        %s244 = scalar_lea.sflag [#allocation5], %s243
        %s245 = sand.u32 %s36, 1
        %s246 = smul.addr %s245, 512
        %s247 = scalar_lea.vmem [#allocation4], %s246
        %p248 = pneg %p49
        %p249 = pneg %p46
        %s250 = sand.u32 %s28, 1
        %s251 = scalar_lea.sflag [#allocation8], %s250
        %s252 = sand.u32 %s62, 1
        %s253 = smul.addr %s252, 512
        %s254 = scalar_lea.vmem [#allocation7], %s253
        %p255 = pneg %p75
        %p256 = pneg %p72
        %s257 = sand.u32 %s28, 1
        %s258 = scalar_lea.sflag [#allocation8], %s257
        %s259 = sand.u32 %s88, 1
        %s260 = smul.addr %s259, 512
        %s261 = scalar_lea.vmem [#allocation9], %s260
        %p262 = pneg %p101
        %p263 = pneg %p98
        %p264 = pneg %p127
        %p265 = pneg %p124
        %s266 = sand.u32 %s114, 1
        %s267 = scalar_lea.sflag [#allocation6], %s266
        %s268 = sand.u32 %s114, 1
        %s269 = smul.addr %s268, 512
        %s270 = scalar_lea.vmem [#allocation10], %s269
        %s271 = smul.u32 64, %s28
        %s272 = smul.u32 64, %s28
        %s273 = smul.u32 64, %s28
        %s274 = smul.u32 64, %s28
        %s275 = sld [smem:[#allocation3]]
        %s276 = sld [smem:[#allocation3 + $0x1]]
        %s277 = sld [smem:[#allocation3 + $0x2]]
        %s278 = sld [smem:[#allocation3 + $0x3]]
        %v279 = vld [vmem:[%s220] sm:$0xff]
        %v280 = vld [vmem:[%s220 + $0x8] sm:$0xff]
        %v281 = vld [vmem:[%s220 + $0x10] sm:$0xff]
        %v282 = vld [vmem:[%s220 + $0x18] sm:$0xff]
        %v283 = vld [vmem:[%s220 + $0x20] sm:$0xff]
        %v284 = vld [vmem:[%s220 + $0x28] sm:$0xff]
        %v285 = vld [vmem:[%s220 + $0x30] sm:$0xff]
        %v286 = vld [vmem:[%s220 + $0x38] sm:$0xff]
        %v287 = vld [vmem:[%s220 + $0x40] sm:$0xff]
        %v288 = vld [vmem:[%s220 + $0x48] sm:$0xff]
        %v289 = vld [vmem:[%s220 + $0x50] sm:$0xff]
        %v290 = vld [vmem:[%s220 + $0x58] sm:$0xff]
        %v291 = vld [vmem:[%s220 + $0x60] sm:$0xff]
        %v292 = vld [vmem:[%s220 + $0x68] sm:$0xff]
        %v293 = vld [vmem:[%s220 + $0x70] sm:$0xff]
        %v294 = vld [vmem:[%s220 + $0x78] sm:$0xff]
        %v295 = vld [vmem:[%s220 + $0x80] sm:$0xff]
        %v296 = vld [vmem:[%s220 + $0x88] sm:$0xff]
        %v297 = vld [vmem:[%s220 + $0x90] sm:$0xff]
        %v298 = vld [vmem:[%s220 + $0x98] sm:$0xff]
        %v299 = vld [vmem:[%s220 + $0xa0] sm:$0xff]
        %v300 = vld [vmem:[%s220 + $0xa8] sm:$0xff]
        %v301 = vld [vmem:[%s220 + $0xb0] sm:$0xff]
        %v302 = vld [vmem:[%s220 + $0xb8] sm:$0xff]
        %v303 = vld [vmem:[%s220 + $0xc0] sm:$0xff]
        %v304 = vld [vmem:[%s220 + $0xc8] sm:$0xff]
        %v305 = vld [vmem:[%s220 + $0xd0] sm:$0xff]
        %v306 = vld [vmem:[%s220 + $0xd8] sm:$0xff]
        %v307 = vld [vmem:[%s220 + $0xe0] sm:$0xff]
        %v308 = vld [vmem:[%s220 + $0xe8] sm:$0xff]
        %v309 = vld [vmem:[%s220 + $0xf0] sm:$0xff]
        %v310 = vld [vmem:[%s220 + $0xf8] sm:$0xff]
        %v311 = vld [vmem:[%s220 + $0x100] sm:$0xff]
        %v312 = vld [vmem:[%s220 + $0x108] sm:$0xff]
        %v313 = vld [vmem:[%s220 + $0x110] sm:$0xff]
        %v314 = vld [vmem:[%s220 + $0x118] sm:$0xff]
        %v315 = vld [vmem:[%s220 + $0x120] sm:$0xff]
        %v316 = vld [vmem:[%s220 + $0x128] sm:$0xff]
        %v317 = vld [vmem:[%s220 + $0x130] sm:$0xff]
        %v318 = vld [vmem:[%s220 + $0x138] sm:$0xff]
        %v319 = vld [vmem:[%s220 + $0x140] sm:$0xff]
        %v320 = vld [vmem:[%s220 + $0x148] sm:$0xff]
        %v321 = vld [vmem:[%s220 + $0x150] sm:$0xff]
        %v322 = vld [vmem:[%s220 + $0x158] sm:$0xff]
        %v323 = vld [vmem:[%s220 + $0x160] sm:$0xff]
        %v324 = vld [vmem:[%s220 + $0x168] sm:$0xff]
        %v325 = vld [vmem:[%s220 + $0x170] sm:$0xff]
        %v326 = vld [vmem:[%s220 + $0x178] sm:$0xff]
        %v327 = vld [vmem:[%s220 + $0x180] sm:$0xff]
        %v328 = vld [vmem:[%s220 + $0x188] sm:$0xff]
        %v329 = vld [vmem:[%s220 + $0x190] sm:$0xff]
        %v330 = vld [vmem:[%s220 + $0x198] sm:$0xff]
        %v331 = vld [vmem:[%s220 + $0x1a0] sm:$0xff]
        %v332 = vld [vmem:[%s220 + $0x1a8] sm:$0xff]
        %v333 = vld [vmem:[%s220 + $0x1b0] sm:$0xff]
        %v334 = vld [vmem:[%s220 + $0x1b8] sm:$0xff]
        %v335 = vld [vmem:[%s220 + $0x1c0] sm:$0xff]
        %v336 = vld [vmem:[%s220 + $0x1c8] sm:$0xff]
        %v337 = vld [vmem:[%s220 + $0x1d0] sm:$0xff]
        %v338 = vld [vmem:[%s220 + $0x1d8] sm:$0xff]
        %v339 = vld [vmem:[%s220 + $0x1e0] sm:$0xff]
        %v340 = vld [vmem:[%s220 + $0x1e8] sm:$0xff]
        %v341 = vld [vmem:[%s220 + $0x1f0] sm:$0xff]
        %v342 = vld [vmem:[%s220 + $0x1f8] sm:$0xff]
        %v343 = vstv %s275
        %v344 = vmul.f32 %v279, %v343
        %v345 = vmul.f32 %v280, %v343
        %v346 = vmul.f32 %v281, %v343
        %v347 = vmul.f32 %v282, %v343
        %v348 = vmul.f32 %v283, %v343
        %v349 = vmul.f32 %v284, %v343
        %v350 = vmul.f32 %v285, %v343
        %v351 = vmul.f32 %v286, %v343
        %v352 = vmul.f32 %v287, %v343
        %v353 = vmul.f32 %v288, %v343
        %v354 = vmul.f32 %v289, %v343
        %v355 = vmul.f32 %v290, %v343
        %v356 = vmul.f32 %v291, %v343
        %v357 = vmul.f32 %v292, %v343
        %v358 = vmul.f32 %v293, %v343
        %v359 = vmul.f32 %v294, %v343
        %v360 = vmul.f32 %v295, %v343
        %v361 = vmul.f32 %v296, %v343
        %v362 = vmul.f32 %v297, %v343
        %v363 = vmul.f32 %v298, %v343
        %v364 = vmul.f32 %v299, %v343
        %v365 = vmul.f32 %v300, %v343
        %v366 = vmul.f32 %v301, %v343
        %v367 = vmul.f32 %v302, %v343
        %v368 = vmul.f32 %v303, %v343
        %v369 = vmul.f32 %v304, %v343
        %v370 = vmul.f32 %v305, %v343
        %v371 = vmul.f32 %v306, %v343
        %v372 = vmul.f32 %v307, %v343
        %v373 = vmul.f32 %v308, %v343
        %v374 = vmul.f32 %v309, %v343
        %v375 = vmul.f32 %v310, %v343
        %v376 = vmul.f32 %v311, %v343
        %v377 = vmul.f32 %v312, %v343
        %v378 = vmul.f32 %v313, %v343
        %v379 = vmul.f32 %v314, %v343
        %v380 = vmul.f32 %v315, %v343
        %v381 = vmul.f32 %v316, %v343
        %v382 = vmul.f32 %v317, %v343
        %v383 = vmul.f32 %v318, %v343
        %v384 = vmul.f32 %v319, %v343
        %v385 = vmul.f32 %v320, %v343
        %v386 = vmul.f32 %v321, %v343
        %v387 = vmul.f32 %v322, %v343
        %v388 = vmul.f32 %v323, %v343
        %v389 = vmul.f32 %v324, %v343
        %v390 = vmul.f32 %v325, %v343
        %v391 = vmul.f32 %v326, %v343
        %v392 = vmul.f32 %v327, %v343
        %v393 = vmul.f32 %v328, %v343
        %v394 = vmul.f32 %v329, %v343
        %v395 = vmul.f32 %v330, %v343
        %v396 = vmul.f32 %v331, %v343
        %v397 = vmul.f32 %v332, %v343
        %v398 = vmul.f32 %v333, %v343
        %v399 = vmul.f32 %v334, %v343
        %v400 = vmul.f32 %v335, %v343
        %v401 = vmul.f32 %v336, %v343
        %v402 = vmul.f32 %v337, %v343
        %v403 = vmul.f32 %v338, %v343
        %v404 = vmul.f32 %v339, %v343
        %v405 = vmul.f32 %v340, %v343
        %v406 = vmul.f32 %v341, %v343
        %v407 = vmul.f32 %v342, %v343
        %v408 = vld [vmem:[%s229] sm:$0xff]
        %v409 = vld [vmem:[%s229 + $0x8] sm:$0xff]
        %v410 = vld [vmem:[%s229 + $0x10] sm:$0xff]
        %v411 = vld [vmem:[%s229 + $0x18] sm:$0xff]
        %v412 = vld [vmem:[%s229 + $0x20] sm:$0xff]
        %v413 = vld [vmem:[%s229 + $0x28] sm:$0xff]
        %v414 = vld [vmem:[%s229 + $0x30] sm:$0xff]
        %v415 = vld [vmem:[%s229 + $0x38] sm:$0xff]
        %v416 = vld [vmem:[%s229 + $0x40] sm:$0xff]
        %v417 = vld [vmem:[%s229 + $0x48] sm:$0xff]
        %v418 = vld [vmem:[%s229 + $0x50] sm:$0xff]
        %v419 = vld [vmem:[%s229 + $0x58] sm:$0xff]
        %v420 = vld [vmem:[%s229 + $0x60] sm:$0xff]
        %v421 = vld [vmem:[%s229 + $0x68] sm:$0xff]
        %v422 = vld [vmem:[%s229 + $0x70] sm:$0xff]
        %v423 = vld [vmem:[%s229 + $0x78] sm:$0xff]
        %v424 = vld [vmem:[%s229 + $0x80] sm:$0xff]
        %v425 = vld [vmem:[%s229 + $0x88] sm:$0xff]
        %v426 = vld [vmem:[%s229 + $0x90] sm:$0xff]
        %v427 = vld [vmem:[%s229 + $0x98] sm:$0xff]
        %v428 = vld [vmem:[%s229 + $0xa0] sm:$0xff]
        %v429 = vld [vmem:[%s229 + $0xa8] sm:$0xff]
        %v430 = vld [vmem:[%s229 + $0xb0] sm:$0xff]
        %v431 = vld [vmem:[%s229 + $0xb8] sm:$0xff]
        %v432 = vld [vmem:[%s229 + $0xc0] sm:$0xff]
        %v433 = vld [vmem:[%s229 + $0xc8] sm:$0xff]
        %v434 = vld [vmem:[%s229 + $0xd0] sm:$0xff]
        %v435 = vld [vmem:[%s229 + $0xd8] sm:$0xff]
        %v436 = vld [vmem:[%s229 + $0xe0] sm:$0xff]
        %v437 = vld [vmem:[%s229 + $0xe8] sm:$0xff]
        %v438 = vld [vmem:[%s229 + $0xf0] sm:$0xff]
        %v439 = vld [vmem:[%s229 + $0xf8] sm:$0xff]
        %v440 = vld [vmem:[%s229 + $0x100] sm:$0xff]
        %v441 = vld [vmem:[%s229 + $0x108] sm:$0xff]
        %v442 = vld [vmem:[%s229 + $0x110] sm:$0xff]
        %v443 = vld [vmem:[%s229 + $0x118] sm:$0xff]
        %v444 = vld [vmem:[%s229 + $0x120] sm:$0xff]
        %v445 = vld [vmem:[%s229 + $0x128] sm:$0xff]
        %v446 = vld [vmem:[%s229 + $0x130] sm:$0xff]
        %v447 = vld [vmem:[%s229 + $0x138] sm:$0xff]
        %v448 = vld [vmem:[%s229 + $0x140] sm:$0xff]
        %v449 = vld [vmem:[%s229 + $0x148] sm:$0xff]
        %v450 = vld [vmem:[%s229 + $0x150] sm:$0xff]
        %v451 = vld [vmem:[%s229 + $0x158] sm:$0xff]
        %v452 = vld [vmem:[%s229 + $0x160] sm:$0xff]
        %v453 = vld [vmem:[%s229 + $0x168] sm:$0xff]
        %v454 = vld [vmem:[%s229 + $0x170] sm:$0xff]
        %v455 = vld [vmem:[%s229 + $0x178] sm:$0xff]
        %v456 = vld [vmem:[%s229 + $0x180] sm:$0xff]
        %v457 = vld [vmem:[%s229 + $0x188] sm:$0xff]
        %v458 = vld [vmem:[%s229 + $0x190] sm:$0xff]
        %v459 = vld [vmem:[%s229 + $0x198] sm:$0xff]
        %v460 = vld [vmem:[%s229 + $0x1a0] sm:$0xff]
        %v461 = vld [vmem:[%s229 + $0x1a8] sm:$0xff]
        %v462 = vld [vmem:[%s229 + $0x1b0] sm:$0xff]
        %v463 = vld [vmem:[%s229 + $0x1b8] sm:$0xff]
        %v464 = vld [vmem:[%s229 + $0x1c0] sm:$0xff]
        %v465 = vld [vmem:[%s229 + $0x1c8] sm:$0xff]
        %v466 = vld [vmem:[%s229 + $0x1d0] sm:$0xff]
        %v467 = vld [vmem:[%s229 + $0x1d8] sm:$0xff]
        %v468 = vld [vmem:[%s229 + $0x1e0] sm:$0xff]
        %v469 = vld [vmem:[%s229 + $0x1e8] sm:$0xff]
        %v470 = vld [vmem:[%s229 + $0x1f0] sm:$0xff]
        %v471 = vld [vmem:[%s229 + $0x1f8] sm:$0xff]
        %v472 = vstv %s276
        %v473 = vmul.f32 %v408, %v472
        %v474 = vmul.f32 %v409, %v472
        %v475 = vmul.f32 %v410, %v472
        %v476 = vmul.f32 %v411, %v472
        %v477 = vmul.f32 %v412, %v472
        %v478 = vmul.f32 %v413, %v472
        %v479 = vmul.f32 %v414, %v472
        %v480 = vmul.f32 %v415, %v472
        %v481 = vmul.f32 %v416, %v472
        %v482 = vmul.f32 %v417, %v472
        %v483 = vmul.f32 %v418, %v472
        %v484 = vmul.f32 %v419, %v472
        %v485 = vmul.f32 %v420, %v472
        %v486 = vmul.f32 %v421, %v472
        %v487 = vmul.f32 %v422, %v472
        %v488 = vmul.f32 %v423, %v472
        %v489 = vmul.f32 %v424, %v472
        %v490 = vmul.f32 %v425, %v472
        %v491 = vmul.f32 %v426, %v472
        %v492 = vmul.f32 %v427, %v472
        %v493 = vmul.f32 %v428, %v472
        %v494 = vmul.f32 %v429, %v472
        %v495 = vmul.f32 %v430, %v472
        %v496 = vmul.f32 %v431, %v472
        %v497 = vmul.f32 %v432, %v472
        %v498 = vmul.f32 %v433, %v472
        %v499 = vmul.f32 %v434, %v472
        %v500 = vmul.f32 %v435, %v472
        %v501 = vmul.f32 %v436, %v472
        %v502 = vmul.f32 %v437, %v472
        %v503 = vmul.f32 %v438, %v472
        %v504 = vmul.f32 %v439, %v472
        %v505 = vmul.f32 %v440, %v472
        %v506 = vmul.f32 %v441, %v472
        %v507 = vmul.f32 %v442, %v472
        %v508 = vmul.f32 %v443, %v472
        %v509 = vmul.f32 %v444, %v472
        %v510 = vmul.f32 %v445, %v472
        %v511 = vmul.f32 %v446, %v472
        %v512 = vmul.f32 %v447, %v472
        %v513 = vmul.f32 %v448, %v472
        %v514 = vmul.f32 %v449, %v472
        %v515 = vmul.f32 %v450, %v472
        %v516 = vmul.f32 %v451, %v472
        %v517 = vmul.f32 %v452, %v472
        %v518 = vmul.f32 %v453, %v472
        %v519 = vmul.f32 %v454, %v472
        %v520 = vmul.f32 %v455, %v472
        %v521 = vmul.f32 %v456, %v472
        %v522 = vmul.f32 %v457, %v472
        %v523 = vmul.f32 %v458, %v472
        %v524 = vmul.f32 %v459, %v472
        %v525 = vmul.f32 %v460, %v472
        %v526 = vmul.f32 %v461, %v472
        %v527 = vmul.f32 %v462, %v472
        %v528 = vmul.f32 %v463, %v472
        %v529 = vmul.f32 %v464, %v472
        %v530 = vmul.f32 %v465, %v472
        %v531 = vmul.f32 %v466, %v472
        %v532 = vmul.f32 %v467, %v472
        %v533 = vmul.f32 %v468, %v472
        %v534 = vmul.f32 %v469, %v472
        %v535 = vmul.f32 %v470, %v472
        %v536 = vmul.f32 %v471, %v472
        %v537 = vadd.f32 %v344, %v473
        %v538 = vadd.f32 %v345, %v474
        %v539 = vadd.f32 %v346, %v475
        %v540 = vadd.f32 %v347, %v476
        %v541 = vadd.f32 %v348, %v477
        %v542 = vadd.f32 %v349, %v478
        %v543 = vadd.f32 %v350, %v479
        %v544 = vadd.f32 %v351, %v480
        %v545 = vadd.f32 %v352, %v481
        %v546 = vadd.f32 %v353, %v482
        %v547 = vadd.f32 %v354, %v483
        %v548 = vadd.f32 %v355, %v484
        %v549 = vadd.f32 %v356, %v485
        %v550 = vadd.f32 %v357, %v486
        %v551 = vadd.f32 %v358, %v487
        %v552 = vadd.f32 %v359, %v488
        %v553 = vadd.f32 %v360, %v489
        %v554 = vadd.f32 %v361, %v490
        %v555 = vadd.f32 %v362, %v491
        %v556 = vadd.f32 %v363, %v492
        %v557 = vadd.f32 %v364, %v493
        %v558 = vadd.f32 %v365, %v494
        %v559 = vadd.f32 %v366, %v495
        %v560 = vadd.f32 %v367, %v496
        %v561 = vadd.f32 %v368, %v497
        %v562 = vadd.f32 %v369, %v498
        %v563 = vadd.f32 %v370, %v499
        %v564 = vadd.f32 %v371, %v500
        %v565 = vadd.f32 %v372, %v501
        %v566 = vadd.f32 %v373, %v502
        %v567 = vadd.f32 %v374, %v503
        %v568 = vadd.f32 %v375, %v504
        %v569 = vadd.f32 %v376, %v505
        %v570 = vadd.f32 %v377, %v506
        %v571 = vadd.f32 %v378, %v507
        %v572 = vadd.f32 %v379, %v508
        %v573 = vadd.f32 %v380, %v509
        %v574 = vadd.f32 %v381, %v510
        %v575 = vadd.f32 %v382, %v511
        %v576 = vadd.f32 %v383, %v512
        %v577 = vadd.f32 %v384, %v513
        %v578 = vadd.f32 %v385, %v514
        %v579 = vadd.f32 %v386, %v515
        %v580 = vadd.f32 %v387, %v516
        %v581 = vadd.f32 %v388, %v517
        %v582 = vadd.f32 %v389, %v518
        %v583 = vadd.f32 %v390, %v519
        %v584 = vadd.f32 %v391, %v520
        %v585 = vadd.f32 %v392, %v521
        %v586 = vadd.f32 %v393, %v522
        %v587 = vadd.f32 %v394, %v523
        %v588 = vadd.f32 %v395, %v524
        %v589 = vadd.f32 %v396, %v525
        %v590 = vadd.f32 %v397, %v526
        %v591 = vadd.f32 %v398, %v527
        %v592 = vadd.f32 %v399, %v528
        %v593 = vadd.f32 %v400, %v529
        %v594 = vadd.f32 %v401, %v530
        %v595 = vadd.f32 %v402, %v531
        %v596 = vadd.f32 %v403, %v532
        %v597 = vadd.f32 %v404, %v533
        %v598 = vadd.f32 %v405, %v534
        %v599 = vadd.f32 %v406, %v535
        %v600 = vadd.f32 %v407, %v536
        %v601 = vld [vmem:[%s238] sm:$0xff]
        %v602 = vld [vmem:[%s238 + $0x8] sm:$0xff]
        %v603 = vld [vmem:[%s238 + $0x10] sm:$0xff]
        %v604 = vld [vmem:[%s238 + $0x18] sm:$0xff]
        %v605 = vld [vmem:[%s238 + $0x20] sm:$0xff]
        %v606 = vld [vmem:[%s238 + $0x28] sm:$0xff]
        %v607 = vld [vmem:[%s238 + $0x30] sm:$0xff]
        %v608 = vld [vmem:[%s238 + $0x38] sm:$0xff]
        %v609 = vld [vmem:[%s238 + $0x40] sm:$0xff]
        %v610 = vld [vmem:[%s238 + $0x48] sm:$0xff]
        %v611 = vld [vmem:[%s238 + $0x50] sm:$0xff]
        %v612 = vld [vmem:[%s238 + $0x58] sm:$0xff]
        %v613 = vld [vmem:[%s238 + $0x60] sm:$0xff]
        %v614 = vld [vmem:[%s238 + $0x68] sm:$0xff]
        %v615 = vld [vmem:[%s238 + $0x70] sm:$0xff]
        %v616 = vld [vmem:[%s238 + $0x78] sm:$0xff]
        %v617 = vld [vmem:[%s238 + $0x80] sm:$0xff]
        %v618 = vld [vmem:[%s238 + $0x88] sm:$0xff]
        %v619 = vld [vmem:[%s238 + $0x90] sm:$0xff]
        %v620 = vld [vmem:[%s238 + $0x98] sm:$0xff]
        %v621 = vld [vmem:[%s238 + $0xa0] sm:$0xff]
        %v622 = vld [vmem:[%s238 + $0xa8] sm:$0xff]
        %v623 = vld [vmem:[%s238 + $0xb0] sm:$0xff]
        %v624 = vld [vmem:[%s238 + $0xb8] sm:$0xff]
        %v625 = vld [vmem:[%s238 + $0xc0] sm:$0xff]
        %v626 = vld [vmem:[%s238 + $0xc8] sm:$0xff]
        %v627 = vld [vmem:[%s238 + $0xd0] sm:$0xff]
        %v628 = vld [vmem:[%s238 + $0xd8] sm:$0xff]
        %v629 = vld [vmem:[%s238 + $0xe0] sm:$0xff]
        %v630 = vld [vmem:[%s238 + $0xe8] sm:$0xff]
        %v631 = vld [vmem:[%s238 + $0xf0] sm:$0xff]
        %v632 = vld [vmem:[%s238 + $0xf8] sm:$0xff]
        %v633 = vld [vmem:[%s238 + $0x100] sm:$0xff]
        %v634 = vld [vmem:[%s238 + $0x108] sm:$0xff]
        %v635 = vld [vmem:[%s238 + $0x110] sm:$0xff]
        %v636 = vld [vmem:[%s238 + $0x118] sm:$0xff]
        %v637 = vld [vmem:[%s238 + $0x120] sm:$0xff]
        %v638 = vld [vmem:[%s238 + $0x128] sm:$0xff]
        %v639 = vld [vmem:[%s238 + $0x130] sm:$0xff]
        %v640 = vld [vmem:[%s238 + $0x138] sm:$0xff]
        %v641 = vld [vmem:[%s238 + $0x140] sm:$0xff]
        %v642 = vld [vmem:[%s238 + $0x148] sm:$0xff]
        %v643 = vld [vmem:[%s238 + $0x150] sm:$0xff]
        %v644 = vld [vmem:[%s238 + $0x158] sm:$0xff]
        %v645 = vld [vmem:[%s238 + $0x160] sm:$0xff]
        %v646 = vld [vmem:[%s238 + $0x168] sm:$0xff]
        %v647 = vld [vmem:[%s238 + $0x170] sm:$0xff]
        %v648 = vld [vmem:[%s238 + $0x178] sm:$0xff]
        %v649 = vld [vmem:[%s238 + $0x180] sm:$0xff]
        %v650 = vld [vmem:[%s238 + $0x188] sm:$0xff]
        %v651 = vld [vmem:[%s238 + $0x190] sm:$0xff]
        %v652 = vld [vmem:[%s238 + $0x198] sm:$0xff]
        %v653 = vld [vmem:[%s238 + $0x1a0] sm:$0xff]
        %v654 = vld [vmem:[%s238 + $0x1a8] sm:$0xff]
        %v655 = vld [vmem:[%s238 + $0x1b0] sm:$0xff]
        %v656 = vld [vmem:[%s238 + $0x1b8] sm:$0xff]
        %v657 = vld [vmem:[%s238 + $0x1c0] sm:$0xff]
        %v658 = vld [vmem:[%s238 + $0x1c8] sm:$0xff]
        %v659 = vld [vmem:[%s238 + $0x1d0] sm:$0xff]
        %v660 = vld [vmem:[%s238 + $0x1d8] sm:$0xff]
        %v661 = vld [vmem:[%s238 + $0x1e0] sm:$0xff]
        %v662 = vld [vmem:[%s238 + $0x1e8] sm:$0xff]
        %v663 = vld [vmem:[%s238 + $0x1f0] sm:$0xff]
        %v664 = vld [vmem:[%s238 + $0x1f8] sm:$0xff]
        %v665 = vstv %s277
        %v666 = vmul.f32 %v601, %v665
        %v667 = vmul.f32 %v602, %v665
        %v668 = vmul.f32 %v603, %v665
        %v669 = vmul.f32 %v604, %v665
        %v670 = vmul.f32 %v605, %v665
        %v671 = vmul.f32 %v606, %v665
        %v672 = vmul.f32 %v607, %v665
        %v673 = vmul.f32 %v608, %v665
        %v674 = vmul.f32 %v609, %v665
        %v675 = vmul.f32 %v610, %v665
        %v676 = vmul.f32 %v611, %v665
        %v677 = vmul.f32 %v612, %v665
        %v678 = vmul.f32 %v613, %v665
        %v679 = vmul.f32 %v614, %v665
        %v680 = vmul.f32 %v615, %v665
        %v681 = vmul.f32 %v616, %v665
        %v682 = vmul.f32 %v617, %v665
        %v683 = vmul.f32 %v618, %v665
        %v684 = vmul.f32 %v619, %v665
        %v685 = vmul.f32 %v620, %v665
        %v686 = vmul.f32 %v621, %v665
        %v687 = vmul.f32 %v622, %v665
        %v688 = vmul.f32 %v623, %v665
        %v689 = vmul.f32 %v624, %v665
        %v690 = vmul.f32 %v625, %v665
        %v691 = vmul.f32 %v626, %v665
        %v692 = vmul.f32 %v627, %v665
        %v693 = vmul.f32 %v628, %v665
        %v694 = vmul.f32 %v629, %v665
        %v695 = vmul.f32 %v630, %v665
        %v696 = vmul.f32 %v631, %v665
        %v697 = vmul.f32 %v632, %v665
        %v698 = vmul.f32 %v633, %v665
        %v699 = vmul.f32 %v634, %v665
        %v700 = vmul.f32 %v635, %v665
        %v701 = vmul.f32 %v636, %v665
        %v702 = vmul.f32 %v637, %v665
        %v703 = vmul.f32 %v638, %v665
        %v704 = vmul.f32 %v639, %v665
        %v705 = vmul.f32 %v640, %v665
        %v706 = vmul.f32 %v641, %v665
        %v707 = vmul.f32 %v642, %v665
        %v708 = vmul.f32 %v643, %v665
        %v709 = vmul.f32 %v644, %v665
        %v710 = vmul.f32 %v645, %v665
        %v711 = vmul.f32 %v646, %v665
        %v712 = vmul.f32 %v647, %v665
        %v713 = vmul.f32 %v648, %v665
        %v714 = vmul.f32 %v649, %v665
        %v715 = vmul.f32 %v650, %v665
        %v716 = vmul.f32 %v651, %v665
        %v717 = vmul.f32 %v652, %v665
        %v718 = vmul.f32 %v653, %v665
        %v719 = vmul.f32 %v654, %v665
        %v720 = vmul.f32 %v655, %v665
        %v721 = vmul.f32 %v656, %v665
        %v722 = vmul.f32 %v657, %v665
        %v723 = vmul.f32 %v658, %v665
        %v724 = vmul.f32 %v659, %v665
        %v725 = vmul.f32 %v660, %v665
        %v726 = vmul.f32 %v661, %v665
        %v727 = vmul.f32 %v662, %v665
        %v728 = vmul.f32 %v663, %v665
        %v729 = vmul.f32 %v664, %v665
        %v730 = vadd.f32 %v537, %v666
        %v731 = vadd.f32 %v538, %v667
        %v732 = vadd.f32 %v539, %v668
        %v733 = vadd.f32 %v540, %v669
        %v734 = vadd.f32 %v541, %v670
        %v735 = vadd.f32 %v542, %v671
        %v736 = vadd.f32 %v543, %v672
        %v737 = vadd.f32 %v544, %v673
        %v738 = vadd.f32 %v545, %v674
        %v739 = vadd.f32 %v546, %v675
        %v740 = vadd.f32 %v547, %v676
        %v741 = vadd.f32 %v548, %v677
        %v742 = vadd.f32 %v549, %v678
        %v743 = vadd.f32 %v550, %v679
        %v744 = vadd.f32 %v551, %v680
        %v745 = vadd.f32 %v552, %v681
        %v746 = vadd.f32 %v553, %v682
        %v747 = vadd.f32 %v554, %v683
        %v748 = vadd.f32 %v555, %v684
        %v749 = vadd.f32 %v556, %v685
        %v750 = vadd.f32 %v557, %v686
        %v751 = vadd.f32 %v558, %v687
        %v752 = vadd.f32 %v559, %v688
        %v753 = vadd.f32 %v560, %v689
        %v754 = vadd.f32 %v561, %v690
        %v755 = vadd.f32 %v562, %v691
        %v756 = vadd.f32 %v563, %v692
        %v757 = vadd.f32 %v564, %v693
        %v758 = vadd.f32 %v565, %v694
        %v759 = vadd.f32 %v566, %v695
        %v760 = vadd.f32 %v567, %v696
        %v761 = vadd.f32 %v568, %v697
        %v762 = vadd.f32 %v569, %v698
        %v763 = vadd.f32 %v570, %v699
        %v764 = vadd.f32 %v571, %v700
        %v765 = vadd.f32 %v572, %v701
        %v766 = vadd.f32 %v573, %v702
        %v767 = vadd.f32 %v574, %v703
        %v768 = vadd.f32 %v575, %v704
        %v769 = vadd.f32 %v576, %v705
        %v770 = vadd.f32 %v577, %v706
        %v771 = vadd.f32 %v578, %v707
        %v772 = vadd.f32 %v579, %v708
        %v773 = vadd.f32 %v580, %v709
        %v774 = vadd.f32 %v581, %v710
        %v775 = vadd.f32 %v582, %v711
        %v776 = vadd.f32 %v583, %v712
        %v777 = vadd.f32 %v584, %v713
        %v778 = vadd.f32 %v585, %v714
        %v779 = vadd.f32 %v586, %v715
        %v780 = vadd.f32 %v587, %v716
        %v781 = vadd.f32 %v588, %v717
        %v782 = vadd.f32 %v589, %v718
        %v783 = vadd.f32 %v590, %v719
        %v784 = vadd.f32 %v591, %v720
        %v785 = vadd.f32 %v592, %v721
        %v786 = vadd.f32 %v593, %v722
        %v787 = vadd.f32 %v594, %v723
        %v788 = vadd.f32 %v595, %v724
        %v789 = vadd.f32 %v596, %v725
        %v790 = vadd.f32 %v597, %v726
        %v791 = vadd.f32 %v598, %v727
        %v792 = vadd.f32 %v599, %v728
        %v793 = vadd.f32 %v600, %v729
        %v794 = vstv %s278
        %v795 = vadd.f32 %v730, %v794
        %v796 = vadd.f32 %v731, %v794
        %v797 = vadd.f32 %v732, %v794
        %v798 = vadd.f32 %v733, %v794
        %v799 = vadd.f32 %v734, %v794
        %v800 = vadd.f32 %v735, %v794
        %v801 = vadd.f32 %v736, %v794
        %v802 = vadd.f32 %v737, %v794
        %v803 = vadd.f32 %v738, %v794
        %v804 = vadd.f32 %v739, %v794
        %v805 = vadd.f32 %v740, %v794
        %v806 = vadd.f32 %v741, %v794
        %v807 = vadd.f32 %v742, %v794
        %v808 = vadd.f32 %v743, %v794
        %v809 = vadd.f32 %v744, %v794
        %v810 = vadd.f32 %v745, %v794
        %v811 = vadd.f32 %v746, %v794
        %v812 = vadd.f32 %v747, %v794
        %v813 = vadd.f32 %v748, %v794
        %v814 = vadd.f32 %v749, %v794
        %v815 = vadd.f32 %v750, %v794
        %v816 = vadd.f32 %v751, %v794
        %v817 = vadd.f32 %v752, %v794
        %v818 = vadd.f32 %v753, %v794
        %v819 = vadd.f32 %v754, %v794
        %v820 = vadd.f32 %v755, %v794
        %v821 = vadd.f32 %v756, %v794
        %v822 = vadd.f32 %v757, %v794
        %v823 = vadd.f32 %v758, %v794
        %v824 = vadd.f32 %v759, %v794
        %v825 = vadd.f32 %v760, %v794
        %v826 = vadd.f32 %v761, %v794
        %v827 = vadd.f32 %v762, %v794
        %v828 = vadd.f32 %v763, %v794
        %v829 = vadd.f32 %v764, %v794
        %v830 = vadd.f32 %v765, %v794
        %v831 = vadd.f32 %v766, %v794
        %v832 = vadd.f32 %v767, %v794
        %v833 = vadd.f32 %v768, %v794
        %v834 = vadd.f32 %v769, %v794
        %v835 = vadd.f32 %v770, %v794
        %v836 = vadd.f32 %v771, %v794
        %v837 = vadd.f32 %v772, %v794
        %v838 = vadd.f32 %v773, %v794
        %v839 = vadd.f32 %v774, %v794
        %v840 = vadd.f32 %v775, %v794
        %v841 = vadd.f32 %v776, %v794
        %v842 = vadd.f32 %v777, %v794
        %v843 = vadd.f32 %v778, %v794
        %v844 = vadd.f32 %v779, %v794
        %v845 = vadd.f32 %v780, %v794
        %v846 = vadd.f32 %v781, %v794
        %v847 = vadd.f32 %v782, %v794
        %v848 = vadd.f32 %v783, %v794
        %v849 = vadd.f32 %v784, %v794
        %v850 = vadd.f32 %v785, %v794
        %v851 = vadd.f32 %v786, %v794
        %v852 = vadd.f32 %v787, %v794
        %v853 = vadd.f32 %v788, %v794
        %v854 = vadd.f32 %v789, %v794
        %v855 = vadd.f32 %v790, %v794
        %v856 = vadd.f32 %v791, %v794
        %v857 = vadd.f32 %v792, %v794
        %v858 = vadd.f32 %v793, %v794
        %859 = vst [vmem:[%s270] sm:$0xff] %v795
        %860 = vst [vmem:[%s270 + $0x8] sm:$0xff] %v796
        %861 = vst [vmem:[%s270 + $0x10] sm:$0xff] %v797
        %862 = vst [vmem:[%s270 + $0x18] sm:$0xff] %v798
        %863 = vst [vmem:[%s270 + $0x20] sm:$0xff] %v799
        %864 = vst [vmem:[%s270 + $0x28] sm:$0xff] %v800
        %865 = vst [vmem:[%s270 + $0x30] sm:$0xff] %v801
        %866 = vst [vmem:[%s270 + $0x38] sm:$0xff] %v802
        %867 = vst [vmem:[%s270 + $0x40] sm:$0xff] %v803
        %868 = vst [vmem:[%s270 + $0x48] sm:$0xff] %v804
        %869 = vst [vmem:[%s270 + $0x50] sm:$0xff] %v805
        %870 = vst [vmem:[%s270 + $0x58] sm:$0xff] %v806
        %871 = vst [vmem:[%s270 + $0x60] sm:$0xff] %v807
        %872 = vst [vmem:[%s270 + $0x68] sm:$0xff] %v808
        %873 = vst [vmem:[%s270 + $0x70] sm:$0xff] %v809
        %874 = vst [vmem:[%s270 + $0x78] sm:$0xff] %v810
        %875 = vst [vmem:[%s270 + $0x80] sm:$0xff] %v811
        %876 = vst [vmem:[%s270 + $0x88] sm:$0xff] %v812
        %877 = vst [vmem:[%s270 + $0x90] sm:$0xff] %v813
        %878 = vst [vmem:[%s270 + $0x98] sm:$0xff] %v814
        %879 = vst [vmem:[%s270 + $0xa0] sm:$0xff] %v815
        %880 = vst [vmem:[%s270 + $0xa8] sm:$0xff] %v816
        %881 = vst [vmem:[%s270 + $0xb0] sm:$0xff] %v817
        %882 = vst [vmem:[%s270 + $0xb8] sm:$0xff] %v818
        %883 = vst [vmem:[%s270 + $0xc0] sm:$0xff] %v819
        %884 = vst [vmem:[%s270 + $0xc8] sm:$0xff] %v820
        %885 = vst [vmem:[%s270 + $0xd0] sm:$0xff] %v821
        %886 = vst [vmem:[%s270 + $0xd8] sm:$0xff] %v822
        %887 = vst [vmem:[%s270 + $0xe0] sm:$0xff] %v823
        %888 = vst [vmem:[%s270 + $0xe8] sm:$0xff] %v824
        %889 = vst [vmem:[%s270 + $0xf0] sm:$0xff] %v825
        %890 = vst [vmem:[%s270 + $0xf8] sm:$0xff] %v826
        %891 = vst [vmem:[%s270 + $0x100] sm:$0xff] %v827
        %892 = vst [vmem:[%s270 + $0x108] sm:$0xff] %v828
        %893 = vst [vmem:[%s270 + $0x110] sm:$0xff] %v829
        %894 = vst [vmem:[%s270 + $0x118] sm:$0xff] %v830
        %895 = vst [vmem:[%s270 + $0x120] sm:$0xff] %v831
        %896 = vst [vmem:[%s270 + $0x128] sm:$0xff] %v832
        %897 = vst [vmem:[%s270 + $0x130] sm:$0xff] %v833
        %898 = vst [vmem:[%s270 + $0x138] sm:$0xff] %v834
        %899 = vst [vmem:[%s270 + $0x140] sm:$0xff] %v835
        %900 = vst [vmem:[%s270 + $0x148] sm:$0xff] %v836
        %901 = vst [vmem:[%s270 + $0x150] sm:$0xff] %v837
        %902 = vst [vmem:[%s270 + $0x158] sm:$0xff] %v838
        %903 = vst [vmem:[%s270 + $0x160] sm:$0xff] %v839
        %904 = vst [vmem:[%s270 + $0x168] sm:$0xff] %v840
        %905 = vst [vmem:[%s270 + $0x170] sm:$0xff] %v841
        %906 = vst [vmem:[%s270 + $0x178] sm:$0xff] %v842
        %907 = vst [vmem:[%s270 + $0x180] sm:$0xff] %v843
        %908 = vst [vmem:[%s270 + $0x188] sm:$0xff] %v844
        %909 = vst [vmem:[%s270 + $0x190] sm:$0xff] %v845
        %910 = vst [vmem:[%s270 + $0x198] sm:$0xff] %v846
        %911 = vst [vmem:[%s270 + $0x1a0] sm:$0xff] %v847
        %912 = vst [vmem:[%s270 + $0x1a8] sm:$0xff] %v848
        %913 = vst [vmem:[%s270 + $0x1b0] sm:$0xff] %v849
        %914 = vst [vmem:[%s270 + $0x1b8] sm:$0xff] %v850
        %915 = vst [vmem:[%s270 + $0x1c0] sm:$0xff] %v851
        %916 = vst [vmem:[%s270 + $0x1c8] sm:$0xff] %v852
        %917 = vst [vmem:[%s270 + $0x1d0] sm:$0xff] %v853
        %918 = vst [vmem:[%s270 + $0x1d8] sm:$0xff] %v854
        %919 = vst [vmem:[%s270 + $0x1e0] sm:$0xff] %v855
        %920 = vst [vmem:[%s270 + $0x1e8] sm:$0xff] %v856
        %921 = vst [vmem:[%s270 + $0x1f0] sm:$0xff] %v857
        %922 = vst [vmem:[%s270 + $0x1f8] sm:$0xff] %v858
        %s923 = sand.u32 %s114, 1
        %s924 = scalar_lea.sflag [#allocation6], %s923
        %s925 = sand.u32 %s114, 1
        %s926 = smul.addr %s925, 512
        %s927 = scalar_lea.vmem [#allocation10], %s926
        // Predicated region
        $region45: #{tpu_custom_call.1} parent=31 // pred_check
          %p928 = pneg %p124
        $region46: #{tpu_custom_call.1} parent=31 // pred_check_branch
          %930 = sbr.rel (%p928) target = $region48
        $region47: #{tpu_custom_call.1} parent=31 // pred_region
          %s931 = smul.u32 64, %s28
          %s933 = ssub.s32 8192, 8192
          %934 = vsyncadd %s924, %s933
          %s935 = smul.addr %s931, 128
          %s936 = scalar_lea.hbm %s4, %s935
          %s937 = sshll.u32 %s927, 4
          %s938 = int_to_ptr.vmem [resolvable:$true] %s937
          %943 = dma.vmem_to_hbm [thread:$0]  %s938, 8192, %s936, %s924, 128, 128, 8
        $region48: #{tpu_custom_call.1} parent=31 // pred_fallthru
          _
      $region32: #{tpu_custom_call.1} parent=5 // pred_fallthru
        _
      %p944 = scmp.le.s32.totalorder 2, %s23
      // Predicated region
      $region49: #{tpu_custom_call.1} parent=5 // pred_check
        %p945 = pneg %p944
      $region50: #{tpu_custom_call.1} parent=5 // pred_check_branch
        %947 = sbr.rel (%p945) target = $region52
      $region51: #{tpu_custom_call.1} parent=5 // pred_region
        %s948 = ssub.s32 %s23, 2
        // Predicated region
        $region53: #{tpu_custom_call.1} parent=51 // pred_check
          %p949 = pneg %p130
        $region54: #{tpu_custom_call.1} parent=51 // pred_check_branch
          %951 = sbr.rel (%p949) target = $region56
        $region55: #{tpu_custom_call.1} parent=51 // pred_region
          %s952 = sand.u32 %s115, 1
          %s953 = scalar_lea.sflag [#allocation6], %s952
          %s954 = sand.u32 %s115, 1
          %s955 = smul.addr %s954, 512
          %s956 = scalar_lea.vmem [#allocation10], %s955
          %957 = dma.done %s953, 8192
        $region56: #{tpu_custom_call.1} parent=51 // pred_fallthru
          _
      $region52: #{tpu_custom_call.1} parent=5 // pred_fallthru
        _
    $region6: #{tpu_custom_call.1} parent=1 // loop_footer
      %s27 = sadd.s32 1, %s23
    $region7: #{tpu_custom_call.1} parent=1 // loop_footer_branch
      %22 = sbr.rel target = $region3
    $region8: #{tpu_custom_call.1} parent=1 // loop_exit
      _
    %958 = vsyncpa [#allocation5], 1
    %s959 = scalar_lea.sflag [#allocation5], 1
    %960 = vsyncpa %s959, 1
    %961 = vsyncpa [#allocation8], 1
    %s962 = scalar_lea.sflag [#allocation8], 1
    %963 = vsyncpa %s962, 1
    %964 = vsyncpa [#allocation6], 1
    %s965 = scalar_lea.sflag [#allocation6], 1
    %966 = vsyncpa %s965, 1

</llo_original>
